<compile_context>
chip_gen: v7x
topology: tpu7x:2x2x1
jax: 0.10.0
libtpu: 0.0.40
codegen_flags: <defaults>
</compile_context>

<pallas_src>
import functools

import jax
import jax.numpy as jnp
from jax import lax
from jax.experimental import pallas as pl
from jax.experimental.pallas import tpu as pltpu


def _regnet_loss_kernel(mel_ref, post_ref, tgt_ref, out_ref, acc_ref, *,
                        loss_type, row_blk, acc_rows, lane, blocks_per_core,
                        total_rows, last_full_block, split, needs_mask):
    """Elementwise-accumulate (mel-tgt) and (post-tgt) errors; reduce at end."""
    if split:
        core = pl.program_id(0)
        step = pl.program_id(1)          # inner (reduction) axis
        block_idx = core * blocks_per_core + step
    else:
        step = pl.program_id(0)
        block_idx = step

    @pl.when(step == 0)
    def _init():
        acc_ref[...] = jnp.zeros_like(acc_ref)

    mel = mel_ref[...].astype(jnp.float32)
    post = post_ref[...].astype(jnp.float32)
    tgt = tgt_ref[...].astype(jnp.float32)

    d1 = mel - tgt
    d2 = post - tgt
    if loss_type == "MSE":
        contrib = d1 * d1 + d2 * d2
    elif loss_type == "L1Loss":
        contrib = jnp.abs(d1) + jnp.abs(d2)
    else:
        raise ValueError("ERROR LOSS TYPE!")

    def _accumulate(c):
        # Fold the (row_blk, lane) block into the small (acc_rows, lane)
        # accumulator with plain vreg adds.  The reshape keeps the trailing
        # (acc_rows, lane) dims, so it stays (8,128)-tile aligned (no copy).
        if acc_rows == row_blk:
            acc_ref[...] += c
        else:
            acc_ref[...] += jnp.sum(
                c.reshape(row_blk // acc_rows, acc_rows, lane), axis=0)

    if needs_mask:
        # Only the partial last block / clamped out-of-range blocks pay for
        # the mask; full blocks take the plain accumulate path.
        is_ragged = block_idx >= last_full_block

        @pl.when(is_ragged)
        def _ragged():
            row_start = block_idx * row_blk
            row_ids = row_start + lax.broadcasted_iota(
                jnp.int32, (row_blk, 1), 0)
            # select (not multiply) so NaN/Inf garbage past the end is zeroed.
            _accumulate(jnp.where(row_ids < total_rows, contrib, 0.0))

        @pl.when(jnp.logical_not(is_ragged))
        def _full():
            _accumulate(contrib)
    else:
        _accumulate(contrib)

    @pl.when(step == blocks_per_core - 1)
    def _finalize():
        out_ref[0, 0] = jnp.sum(acc_ref[...])


def _tpu_defaults():
    """Per-generation (block_bytes, vmem_limit_bytes, multi_tensorcore)."""
    kind = ""
    try:
        kind = jax.devices()[0].device_kind.lower()
    except Exception:
        pass
    if "v7" in kind or "7x" in kind:
        # 64 MiB physical VMEM, 2 TensorCores, ~3.2 TB/s HBM:
        # 3 inputs x 4 MiB x 2 buffers ~ 24 MiB, well inside a 52 MiB limit.
        return 4 * 1024 * 1024, 52 * 1024 * 1024, True
    if "v6" in kind:
        # 128 MiB VMEM, 1 TensorCore: bigger tiles are free.
        return 6 * 1024 * 1024, 96 * 1024 * 1024, False
    # v5e / v5p / v4 / unknown: 2 MiB steps already amortize the 0.35 us
    # per-step overhead at ~820 GB/s; stay conservative.
    return 2 * 1024 * 1024, 40 * 1024 * 1024, False


def regnet_loss(model_output, targets, *, loss_type="MSE",
                block_bytes=None, vmem_limit_bytes=None):
    """JAX/Pallas equivalent of RegnetLoss.forward.

    model_output: (mel_out, mel_out_postnet), each shaped like targets
    targets:      mel target, e.g. (B, n_mel, T)
    Returns a scalar float32 loss.
    """
    if loss_type not in ("MSE", "L1Loss"):
        raise ValueError("ERROR LOSS TYPE!")

    mel_out, mel_out_postnet = model_output
    assert mel_out.shape == targets.shape == mel_out_postnet.shape

    def_bb, def_vmem, multi_core = _tpu_defaults()
    if block_bytes is None:
        block_bytes = def_bb
    if vmem_limit_bytes is None:
        vmem_limit_bytes = def_vmem

    n_true = int(targets.size)  # 'mean' denominator for each loss term

    def _err_sum(a, b, t):
        da = (a - t).astype(jnp.float32)
        db = (b - t).astype(jnp.float32)
        if loss_type == "MSE":
            return jnp.sum(da * da) + jnp.sum(db * db)
        return jnp.sum(jnp.abs(da)) + jnp.sum(jnp.abs(db))

    mel_f = mel_out.reshape(-1)
    post_f = mel_out_postnet.reshape(-1)
    tgt_f = targets.reshape(-1)

    # The kernel handles the largest 128-divisible prefix; the <128-element
    # tail (rare) is added with plain jnp in the wrapper.  No full-tensor pad.
    n_main = (n_true // 128) * 128
    if n_main == 0:
        return _err_sum(mel_f, post_f, tgt_f) / jnp.float32(n_true)

    tail_sum = jnp.float32(0.0)
    if n_main != n_true:
        tail_sum = _err_sum(mel_f[n_main:], post_f[n_main:], tgt_f[n_main:])
        mel_f, post_f, tgt_f = mel_f[:n_main], post_f[:n_main], tgt_f[:n_main]

    # Lane-dense 2-D layout: last dim a large multiple of 128.
    lane = next(c for c in (1024, 512, 256, 128) if n_main % c == 0)
    rows = n_main // lane
    mel2 = mel_f.reshape(rows, lane)
    post2 = post_f.reshape(rows, lane)
    tgt2 = tgt_f.reshape(rows, lane)

    # Tile sizing: ~block_bytes of each input per grid step, rows multiple of 8.
    bpe = mel2.dtype.itemsize
    target_rows = max(8, (block_bytes // (bpe * lane)) // 8 * 8)
    row_blk = rows if rows <= target_rows else target_rows
    num_blocks = -(-rows // row_blk)

    # 2-way TensorCore split only on multi-TC chips (v7x); single-TC chips use
    # a 1-D grid (no wasted clamped block, no mask when divisible, one epilogue).
    split = bool(multi_core and num_blocks >= 2)
    n_split = 2 if split else 1
    blocks_per_core = -(-num_blocks // n_split)
    needs_mask = (n_split * blocks_per_core * row_blk != rows)
    last_full_block = rows // row_blk           # first block needing the mask
    acc_rows = 8 if row_blk % 8 == 0 else row_blk

    kernel = functools.partial(
        _regnet_loss_kernel,
        loss_type=loss_type, row_blk=row_blk, acc_rows=acc_rows, lane=lane,
        blocks_per_core=blocks_per_core, total_rows=rows,
        last_full_block=last_full_block, split=split, needs_mask=needs_mask)

    if split:
        # Clamp so fully out-of-range steps re-read the last valid block
        # (their contribution is masked to zero inside the kernel).
        in_index = lambda c, i: (jnp.minimum(c * blocks_per_core + i,
                                             num_blocks - 1), 0)
        out_index = lambda c, i: (c, 0)
        grid = (n_split, blocks_per_core)
    else:
        in_index = lambda i: (i, 0)
        out_index = lambda i: (0, 0)
        grid = (blocks_per_core,)

    def _call(dim_sem):
        return pl.pallas_call(
            kernel,
            out_shape=jax.ShapeDtypeStruct((n_split, 1), jnp.float32),
            grid_spec=pltpu.PrefetchScalarGridSpec(
                num_scalar_prefetch=0,
                grid=grid,
                in_specs=[pl.BlockSpec((row_blk, lane), in_index)] * 3,
                out_specs=pl.BlockSpec((1, 1), out_index,
                                       memory_space=pltpu.SMEM),
                scratch_shapes=[pltpu.VMEM((acc_rows, lane), jnp.float32)],
            ),
            compiler_params=pltpu.CompilerParams(
                dimension_semantics=dim_sem,
                vmem_limit_bytes=vmem_limit_bytes,
            ),
        )(mel2, post2, tgt2)

    if split:
        core_par = getattr(pltpu, "CORE_PARALLEL", None)
        arb = getattr(pltpu, "ARBITRARY", "arbitrary")
        try:
            # CORE_PARALLEL guarantees the leading axis shards across both
            # TensorCores on v7x (plain "parallel" may not change codegen).
            partials = _call((core_par, arb) if core_par is not None
                             else ("parallel", "arbitrary"))
        except Exception:
            partials = _call(("parallel", "arbitrary"))
    else:
        partials = _call(("arbitrary",))

    # MSELoss(a,t) + MSELoss(b,t) with mean reduction == (sum_a + sum_b) / N.
    return (jnp.sum(partials) + tail_sum) / jnp.float32(n_true)


def _reference(model_output, targets, loss_type):
    mel_out, mel_out_postnet = model_output
    if loss_type == "MSE":
        f = lambda a, b: jnp.mean((a - b) ** 2)
    else:
        f = lambda a, b: jnp.mean(jnp.abs(a - b))
    return f(mel_out, targets) + f(mel_out_postnet, targets)


if __name__ == "__main__":
    key = jax.random.PRNGKey(0)

    # (shape, kwargs) — second case uses tiny blocks to exercise the
    # partial-block mask (and the 2-TC split on v7x); third exercises the
    # numel % 128 != 0 tail path (no jnp.pad).
    cases = [
        ((2, 16, 64), {}),                              # lane-dense, 1 block
        ((2, 16, 2400), {"block_bytes": 64 * 1024}),    # multi-block + mask
        ((2, 16, 37), {}),                              # wrapper tail path
    ]

    ok = True
    for idx, (shape, kw) in enumerate(cases):
        k1, k2, k3 = jax.random.split(jax.random.fold_in(key, idx), 3)
        mel_out = jax.random.normal(k1, shape, dtype=jnp.float32)
        mel_out_postnet = jax.random.normal(k2, shape, dtype=jnp.float32)
        mel_target = jax.random.normal(k3, shape, dtype=jnp.float32)

        for loss_type in ("MSE", "L1Loss"):
            loss = regnet_loss((mel_out, mel_out_postnet), mel_target,
                               loss_type=loss_type, **kw)
            loss = jax.block_until_ready(loss)
            ref = _reference((mel_out, mel_out_postnet), mel_target, loss_type)
            if not jnp.allclose(loss, ref, rtol=1e-4, atol=1e-6):
                ok = False
                print(f"MISMATCH shape={shape} {loss_type}: "
                      f"pallas={loss} ref={ref}")

    if ok:
        print("KERNEL_OK")
</pallas_src>

<mosaic_0001>
module attributes {stable_mosaic.version = 11 : i64} {
  func.func @_regnet_loss_kernel(%arg0: i32, %arg1: memref<2x1024xf32, #tpu.memory_space<vmem>>, %arg2: memref<2x1024xf32, #tpu.memory_space<vmem>>, %arg3: memref<2x1024xf32, #tpu.memory_space<vmem>>, %arg4: memref<1x1xf32, #tpu.memory_space<smem>>, %arg5: memref<2x1024xf32, #tpu.memory_space<vmem>>) attributes {dimension_semantics = [#tpu.dimension_semantics<arbitrary>], iteration_bounds = array<i64: 1>, scalar_prefetch = 0 : i64, scratch_operands = 1 : i64, tpu.core_type = #tpu.core_type<tc>, window_params = [{transform_indices = @transform_0, window_bounds = array<i64: 2, 1024>}, {transform_indices = @transform_1, window_bounds = array<i64: 2, 1024>}, {transform_indices = @transform_2, window_bounds = array<i64: 2, 1024>}, {transform_indices = @transform_3, window_bounds = array<i64: 1, 1>}]} {
    %c0_i32 = arith.constant 0 : i32
    %0 = arith.cmpi eq, %arg0, %c0_i32 : i32
    %1 = arith.extui %0 : i1 to i32
    %c0_i32_0 = arith.constant 0 : i32
    %2 = arith.cmpi ne, %1, %c0_i32_0 : i32
    scf.if %2 {
      %cst = arith.constant 0.000000e+00 : f32
      %17 = vector.broadcast %cst : f32 to vector<2x1024xf32>
      %c0_12 = arith.constant 0 : index
      %c0_13 = arith.constant 0 : index
      %18 = vector.load %arg5[%c0_12, %c0_13] : memref<2x1024xf32, #tpu.memory_space<vmem>>, vector<2x1024xf32>
      tpu.vector_store %arg5[%c0_12, %c0_13], %17 {strides = array<i32>} : memref<2x1024xf32, #tpu.memory_space<vmem>>, vector<2x1024xf32>,
    } else {
    }
    %c0 = arith.constant 0 : index
    %c0_1 = arith.constant 0 : index
    %3 = vector.load %arg1[%c0, %c0_1] : memref<2x1024xf32, #tpu.memory_space<vmem>>, vector<2x1024xf32>
    %c0_2 = arith.constant 0 : index
    %c0_3 = arith.constant 0 : index
    %4 = vector.load %arg2[%c0_2, %c0_3] : memref<2x1024xf32, #tpu.memory_space<vmem>>, vector<2x1024xf32>
    %c0_4 = arith.constant 0 : index
    %c0_5 = arith.constant 0 : index
    %5 = vector.load %arg3[%c0_4, %c0_5] : memref<2x1024xf32, #tpu.memory_space<vmem>>, vector<2x1024xf32>
    %6 = arith.subf %3, %5 : vector<2x1024xf32>
    %7 = arith.subf %4, %5 : vector<2x1024xf32>
    %8 = arith.mulf %6, %6 : vector<2x1024xf32>
    %9 = arith.mulf %7, %7 : vector<2x1024xf32>
    %10 = arith.addf %8, %9 : vector<2x1024xf32>
    %c0_6 = arith.constant 0 : index
    %c0_7 = arith.constant 0 : index
    %11 = vector.load %arg5[%c0_6, %c0_7] : memref<2x1024xf32, #tpu.memory_space<vmem>>, vector<2x1024xf32>
    %12 = arith.addf %11, %10 : vector<2x1024xf32>
    %c0_8 = arith.constant 0 : index
    %c0_9 = arith.constant 0 : index
    %13 = vector.load %arg5[%c0_8, %c0_9] : memref<2x1024xf32, #tpu.memory_space<vmem>>, vector<2x1024xf32>
    tpu.vector_store %arg5[%c0_8, %c0_9], %12 {strides = array<i32>} : memref<2x1024xf32, #tpu.memory_space<vmem>>, vector<2x1024xf32>,
    %c0_i32_10 = arith.constant 0 : i32
    %14 = arith.cmpi eq, %arg0, %c0_i32_10 : i32
    %15 = arith.extui %14 : i1 to i32
    %c0_i32_11 = arith.constant 0 : i32
    %16 = arith.cmpi ne, %15, %c0_i32_11 : i32
    scf.if %16 {
      %c0_12 = arith.constant 0 : index
      %c0_13 = arith.constant 0 : index
      %17 = vector.load %arg5[%c0_12, %c0_13] : memref<2x1024xf32, #tpu.memory_space<vmem>>, vector<2x1024xf32>
      %18 = vector.shape_cast %17 : vector<2x1024xf32> to vector<1x2x1024xf32>
      %cst = arith.constant dense<0.000000e+00> : vector<1xf32>
      %19 = vector.multi_reduction <add>, %18, %cst [1, 2] : vector<1x2x1024xf32> to vector<1xf32>
      %20 = vector.shape_cast %19 : vector<1xf32> to vector<1x1x1xf32>
      %21 = vector.extract %20[0, 0, 0] : f32 from vector<1x1x1xf32>
      %c0_14 = arith.constant 0 : index
      %c0_15 = arith.constant 0 : index
      %22 = memref.load %arg4[%c0_14, %c0_15] : memref<1x1xf32, #tpu.memory_space<smem>>
      memref.store %21, %arg4[%c0_14, %c0_15] : memref<1x1xf32, #tpu.memory_space<smem>>
    } else {
    }
    return
  }
  func.func @transform_0(%arg0: i32) -> (i32, i32) {
    %c0_i32 = arith.constant 0 : i32
    %c0_i32_0 = arith.constant 0 : i32
    return %arg0, %c0_i32 : i32, i32
  }
  func.func @transform_1(%arg0: i32) -> (i32, i32) {
    %c0_i32 = arith.constant 0 : i32
    %c0_i32_0 = arith.constant 0 : i32
    return %arg0, %c0_i32 : i32, i32
  }
  func.func @transform_2(%arg0: i32) -> (i32, i32) {
    %c0_i32 = arith.constant 0 : i32
    %c0_i32_0 = arith.constant 0 : i32
    return %arg0, %c0_i32 : i32, i32
  }
  func.func @transform_3(%arg0: i32) -> (i32, i32) {
    %c0_i32 = arith.constant 0 : i32
    %c0_i32_0 = arith.constant 0 : i32
    %c0_i32_1 = arith.constant 0 : i32
    return %c0_i32, %c0_i32_0 : i32, i32
  }
}

</mosaic_0001>

<llo_original>
// kernel: tpu_custom_call.1
$region0: #{tpu_custom_call.1}
  #allocation0 [shape = 'u32[]', space=smem, size = 0x4, offset = 0x4, fixed_abs, tag = 'smem constant byte address 0x4 - core index']
  #allocation1 [shape = 'u32[144,128]{1,0:T(1,128)}', space=vmem, size = 0x12000, scoped, tag = 'internal scratch']
  #allocation2 [shape = 'f32[2,1024]{1,0:T(2,128)}', space=vmem, size = 0x2000, scoped, tag = 'scratch operand']
  %s0 = inlined_call_operand.hbm [shape: f32[2,1024], index: 0, kind: input, shape index: {}]
  %s1 = inlined_call_operand.hbm [shape: f32[2,1024], index: 1, kind: input, shape index: {}]
  %s2 = inlined_call_operand.hbm [shape: f32[2,1024], index: 2, kind: input, shape index: {}]
  %s3 = inlined_call_operand.hbm [shape: f32[1,1], index: 3, kind: output, shape index: {}]
  %s4 = sld [smem:[#allocation0]]
  $region42: #{tpu_custom_call.1} parent=0
    _
  %s6 = ssub.s32 1, %s4
  %s7 = scalar_select 0, %s6, %s4
  $region1: #{tpu_custom_call.1} parent=0
    #allocation3 [shape = 'u8[8192]{0}', space=vmem, size = 0x2000, scoped, tag = 'input window, operand 0, single buffered']
    #allocation4 [shape = 's32[1]{0}', space=sflag, size = 0x4, scoped, tag = 'scoped memory for tpu_custom_call.1']
    #allocation5 [shape = 's32[1]{0}', space=sflag, size = 0x4, scoped, tag = 'scoped memory for tpu_custom_call.1']
    #allocation6 [shape = 'u8[8192]{0}', space=vmem, size = 0x2000, scoped, tag = 'input window, operand 1, single buffered']
    #allocation7 [shape = 's32[1]{0}', space=sflag, size = 0x4, scoped, tag = 'scoped memory for tpu_custom_call.1']
    #allocation8 [shape = 'u8[8192]{0}', space=vmem, size = 0x2000, scoped, tag = 'input window, operand 2, single buffered']
    #allocation9 [shape = 'u8[512]{0}', space=smem, size = 0x200, scoped, tag = 'output window, operand 0, single buffered']
    %8 = vsyncpa [#allocation4], 0
    %9 = vsyncpa [#allocation7], 0
    %10 = vsyncpa [#allocation5], 0
    // Predicated region
    $region2: #{tpu_custom_call.1} parent=1 // pred_check
      _
    $region3: #{tpu_custom_call.1} parent=1 // pred_check_branch
      %12 = sbr.rel (0) target = $region5
    $region4: #{tpu_custom_call.1} parent=1 // pred_region
      %s14 = ssub.s32 256, 256
      %15 = vsyncadd [#allocation4], %s14
      %s17 = sshll.u32 [#allocation3], 4
      %s18 = int_to_ptr.vmem [resolvable:$true] %s17
      %20 = dma.hbm_to_vmem [thread:$0]  %s0, 256, %s18, [#allocation4]
    $region5: #{tpu_custom_call.1} parent=1 // pred_fallthru
      _
    // Predicated region
    $region6: #{tpu_custom_call.1} parent=1 // pred_check
      _
    $region7: #{tpu_custom_call.1} parent=1 // pred_check_branch
      %22 = sbr.rel (0) target = $region9
    $region8: #{tpu_custom_call.1} parent=1 // pred_region
      %s24 = ssub.s32 256, 256
      %25 = vsyncadd [#allocation7], %s24
      %s27 = sshll.u32 [#allocation6], 4
      %s28 = int_to_ptr.vmem [resolvable:$true] %s27
      %30 = dma.hbm_to_vmem [thread:$0]  %s1, 256, %s28, [#allocation7]
    $region9: #{tpu_custom_call.1} parent=1 // pred_fallthru
      _
    // Predicated region
    $region10: #{tpu_custom_call.1} parent=1 // pred_check
      _
    $region11: #{tpu_custom_call.1} parent=1 // pred_check_branch
      %32 = sbr.rel (0) target = $region13
    $region12: #{tpu_custom_call.1} parent=1 // pred_region
      %s34 = ssub.s32 256, 256
      %35 = vsyncadd [#allocation7], %s34
      %s37 = sshll.u32 [#allocation8], 4
      %s38 = int_to_ptr.vmem [resolvable:$true] %s37
      %40 = dma.hbm_to_vmem [thread:$0]  %s2, 256, %s38, [#allocation7]
    $region13: #{tpu_custom_call.1} parent=1 // pred_fallthru
      _
    // Predicated region
    $region14: #{tpu_custom_call.1} parent=1 // pred_check
      _
    $region15: #{tpu_custom_call.1} parent=1 // pred_check_branch
      %42 = sbr.rel (0) target = $region17
    $region16: #{tpu_custom_call.1} parent=1 // pred_region
      %43 = dma.done [#allocation4], 256
    $region17: #{tpu_custom_call.1} parent=1 // pred_fallthru
      _
    // Predicated region
    $region18: #{tpu_custom_call.1} parent=1 // pred_check
      _
    $region19: #{tpu_custom_call.1} parent=1 // pred_check_branch
      %45 = sbr.rel (0) target = $region21
    $region20: #{tpu_custom_call.1} parent=1 // pred_region
      %46 = dma.done [#allocation7], 256
    $region21: #{tpu_custom_call.1} parent=1 // pred_fallthru
      _
    // Predicated region
    $region22: #{tpu_custom_call.1} parent=1 // pred_check
      _
    $region23: #{tpu_custom_call.1} parent=1 // pred_check_branch
      %48 = sbr.rel (0) target = $region25
    $region24: #{tpu_custom_call.1} parent=1 // pred_region
      %49 = dma.done [#allocation7], 256
    $region25: #{tpu_custom_call.1} parent=1 // pred_fallthru
      _
    %p50 = scmp.eq.s32.totalorder 0, 0
    // Predicated region
    $region26: #{tpu_custom_call.1} parent=1 // pred_check
      %p51 = pneg %p50
    $region27: #{tpu_custom_call.1} parent=1 // pred_check_branch
      %53 = sbr.rel (%p51) target = $region29
    $region28: #{tpu_custom_call.1} parent=1 // pred_region
      %54 = vst [vmem:[#allocation2] sm:$0xff] 0.0
      %55 = vst [vmem:[#allocation2 + $0x8] sm:$0xff] 0.0
    $region29: #{tpu_custom_call.1} parent=1 // pred_fallthru
      _
    %v56 = vld [vmem:[#allocation3] sm:$0xff]
    %v57 = vld [vmem:[#allocation3 + $0x8] sm:$0xff]
    %v58 = vld [vmem:[#allocation6] sm:$0xff]
    %v59 = vld [vmem:[#allocation6 + $0x8] sm:$0xff]
    %v60 = vld [vmem:[#allocation8] sm:$0xff]
    %v61 = vld [vmem:[#allocation8 + $0x8] sm:$0xff]
    %v62 = vsub.f32 %v56, %v60
    %v63 = vsub.f32 %v57, %v61
    %v64 = vsub.f32 %v58, %v60
    %v65 = vsub.f32 %v59, %v61
    %v66 = vmul.f32 %v62, %v62
    %v67 = vmul.f32 %v63, %v63
    %v68 = vmul.f32 %v64, %v64
    %v69 = vmul.f32 %v65, %v65
    %v70 = vadd.f32 %v66, %v68
    %v71 = vadd.f32 %v67, %v69
    %v72 = vld [vmem:[#allocation2] sm:$0xff]
    %v73 = vld [vmem:[#allocation2 + $0x8] sm:$0xff]
    %v74 = vadd.f32 %v72, %v70
    %v75 = vadd.f32 %v73, %v71
    %76 = vst [vmem:[#allocation2] sm:$0xff] %v74
    %77 = vst [vmem:[#allocation2 + $0x8] sm:$0xff] %v75
    // Predicated region
    $region30: #{tpu_custom_call.1} parent=1 // pred_check
      %p78 = pneg %p50
    $region31: #{tpu_custom_call.1} parent=1 // pred_check_branch
      %80 = sbr.rel (%p78) target = $region33
    $region32: #{tpu_custom_call.1} parent=1 // pred_region
      %v81 = vld [vmem:[#allocation2] sm:$0xff]
      %v82 = vld [vmem:[#allocation2 + $0x8] sm:$0xff]
      %v85 = vcombine.high %v81, %v81
      %v87 = vunpack.c.l.s4 1983009808
      %v88 = vunpack.c.0.s8 %v87
      %v89 = vlaneseq
      %v90 = vshrl.u32 %v89, 7
      %v91 = vsub.s32 %v88, %v90
      %v92 = vrot.slane %v81, %v91
      %v94 = vunpack.c.l.s4 1983009808
      %v95 = vunpack.c.0.s8 %v94
      %v96 = vlaneseq
      %v97 = vshrl.u32 %v96, 7
      %v98 = vsub.s32 %v95, %v97
      %v99 = vrot.slane %v85, %v98
      %v100 = vcombine.high %v92, %v92
      %v101 = vcombine.high %v99, %v99
      %v102 = vcombine.high %v82, %v82
      %v104 = vunpack.c.l.s4 1983009808
      %v105 = vunpack.c.0.s8 %v104
      %v106 = vlaneseq
      %v107 = vshrl.u32 %v106, 7
      %v108 = vsub.s32 %v105, %v107
      %v109 = vrot.slane %v82, %v108
      %v111 = vunpack.c.l.s4 1983009808
      %v112 = vunpack.c.0.s8 %v111
      %v113 = vlaneseq
      %v114 = vshrl.u32 %v113, 7
      %v115 = vsub.s32 %v112, %v114
      %v116 = vrot.slane %v102, %v115
      %v117 = vcombine.high %v109, %v109
      %v118 = vcombine.high %v116, %v116
      %vm127 = vcmask 1041408
      %v128 = vsel %vm127, %v92, 0.0
      %v129 = vsel %vm127, %v100, 0.0
      %v130 = vadd.f32 %v128, %v129
      %v131 = vsel %vm127, %v99, 0.0
      %v132 = vadd.f32 %v130, %v131
      %v133 = vsel %vm127, %v101, 0.0
      %v134 = vadd.f32 %v132, %v133
      %v135 = vsel %vm127, %v109, 0.0
      %v136 = vadd.f32 %v134, %v135
      %v137 = vsel %vm127, %v117, 0.0
      %v138 = vadd.f32 %v136, %v137
      %v139 = vsel %vm127, %v116, 0.0
      %v140 = vadd.f32 %v138, %v139
      %v141 = vsel %vm127, %v118, 0.0
      %v142 = vadd.f32 %v140, %v141
      %143 = vadd.xlane.f32.xlu0 %v142
      %v144 = vpop.xlane.xlu0 %143
      %v145 = vrot.slane %v144, 4
      %v146 = vadd.f32 %v144, %v145
      %v147 = vrot.slane %v146, 2
      %v148 = vadd.f32 %v146, %v147
      %v149 = vrot.slane %v148, 1
      %v150 = vadd.f32 %v148, %v149
      %s151 = vtos %v150
      %s152 = scalar_lea.smem [#allocation9], 0
      %153 = sst [smem:[%s152]] %s151
    $region33: #{tpu_custom_call.1} parent=1 // pred_fallthru
      _
    // Predicated region
    $region34: #{tpu_custom_call.1} parent=1 // pred_check
      _
    $region35: #{tpu_custom_call.1} parent=1 // pred_check_branch
      %155 = sbr.rel (0) target = $region37
    $region36: #{tpu_custom_call.1} parent=1 // pred_region
      %s157 = ssub.s32 16, 16
      %158 = vsyncadd [#allocation5], %s157
      %161 = dma.smem_to_hbm [#allocation9], 16, %s3, [#allocation5]
    $region37: #{tpu_custom_call.1} parent=1 // pred_fallthru
      _
    // Predicated region
    $region38: #{tpu_custom_call.1} parent=1 // pred_check
      _
    $region39: #{tpu_custom_call.1} parent=1 // pred_check_branch
      %163 = sbr.rel (0) target = $region41
    $region40: #{tpu_custom_call.1} parent=1 // pred_region
      %164 = dma.done [#allocation5], 16
    $region41: #{tpu_custom_call.1} parent=1 // pred_fallthru
      _
    %165 = sfence
    %166 = vsyncpa [#allocation4], 1
    %167 = vsyncpa [#allocation7], 1
    %168 = vsyncpa [#allocation5], 1

</llo_original>
